<compile_context>
chip_gen: v5e
topology: v5e:2x2
jax: 0.10.0
libtpu: 0.0.40
codegen_flags: <defaults>
</compile_context>

<pallas_src>
import functools

import jax
import jax.numpy as jnp
from jax.experimental import pallas as pl
from jax.experimental.pallas import tpu as pltpu

VOCAB = 32
EMB = 8
SEQ = 12            # 12 * 8 = 96 = fc2 input size
IN_FLAT = SEQ * EMB  # 96
HID = 64
OUT = 6             # model_config['output_size']
OUT_PAD = 128       # lane-dense padded output width
BATCH = 4


def _critic_kernel(n_real, states_ref, table_ref, b2_ref, w3_ref, b3_ref, out_ref):
    """Fused embedding-gather + fc2 + relu + fc3.

    states_ref: (B_pad, SEQ) int32, SMEM (scalar-prefetched).
    table_ref:  (SEQ*VOCAB, HID) f32; row i*VOCAB+v == emb[v] @ W2[i*8:(i+1)*8].
    b2_ref:     (1, HID) f32.
    w3_ref:     (HID, OUT_PAD) f32 (zero-padded columns beyond OUT).
    b3_ref:     (1, OUT_PAD) f32 (zero-padded).
    out_ref:    (B_pad, OUT_PAD) f32.
    """
    b2 = b2_ref[...]                       # (1, HID)
    b_pad = out_ref.shape[0]

    rows = []
    for b in range(b_pad):                 # static unroll (B_pad = 8)
        if b < n_real:
            acc = b2                       # fold fc2 bias into accumulator init
            for i in range(SEQ):           # static unroll (SEQ = 12)
                idx = i * VOCAB + states_ref[b, i]          # scalar from SMEM
                acc = acc + table_ref[pl.ds(idx, 1), :]     # (1, HID) row gather
            rows.append(acc)
        else:
            rows.append(jnp.zeros((1, HID), dtype=jnp.float32))

    h = jnp.maximum(jnp.concatenate(rows, axis=0), 0.0)     # (B_pad, HID) relu(fc2)
    q = jnp.dot(h, w3_ref[...], preferred_element_type=jnp.float32) + b3_ref[...]
    out_ref[...] = q.astype(out_ref.dtype)                  # full (8, 128) vreg store


def discrete_critic_discrete_obs(states, emb, w2, b2, w3, b3):
    """states: (B, SEQ) int32 in [0, VOCAB). Returns (B, OUT) float32."""
    batch, seq = states.shape
    assert seq == SEQ
    out_size = w3.shape[1]
    b_pad = max(8, ((batch + 7) // 8) * 8)

    # --- host/XLA-side (input-independent) precompute -----------------------
    # table[i*VOCAB + v, :] = emb[v] @ W2[i*EMB:(i+1)*EMB, :]
    table = jnp.einsum('ve,ieh->ivh', emb.astype(jnp.float32),
                       w2.astype(jnp.float32).reshape(SEQ, EMB, HID))
    table = table.reshape(SEQ * VOCAB, HID)

    # Lane-dense fc3: pad OUT -> OUT_PAD columns with zeros.
    w3p = jnp.zeros((HID, OUT_PAD), jnp.float32).at[:, :out_size].set(w3)
    b3p = jnp.zeros((1, OUT_PAD), jnp.float32).at[:, :out_size].set(b3.reshape(1, -1))
    b2r = b2.reshape(1, HID).astype(jnp.float32)

    # Pad batch to a full sublane tile (8 rows); pad rows use index 0 (unused).
    states_p = jnp.zeros((b_pad, SEQ), jnp.int32).at[:batch].set(states.astype(jnp.int32))

    cost = pl.CostEstimate(
        flops=2 * b_pad * (IN_FLAT * HID + HID * OUT_PAD),
        transcendentals=0,
        bytes_accessed=4 * (states_p.size + table.size + b2r.size
                            + w3p.size + b3p.size + b_pad * OUT_PAD),
    )

    q_pad = pl.pallas_call(
        functools.partial(_critic_kernel, batch),
        out_shape=jax.ShapeDtypeStruct((b_pad, OUT_PAD), jnp.float32),
        grid_spec=pltpu.PrefetchScalarGridSpec(
            num_scalar_prefetch=1,             # states -> SMEM, scalar reads
            grid=(1,),
            in_specs=[
                pl.BlockSpec(table.shape, lambda i, s: (0, 0)),
                pl.BlockSpec(b2r.shape, lambda i, s: (0, 0)),
                pl.BlockSpec(w3p.shape, lambda i, s: (0, 0)),
                pl.BlockSpec(b3p.shape, lambda i, s: (0, 0)),
            ],
            out_specs=pl.BlockSpec((b_pad, OUT_PAD), lambda i, s: (0, 0)),
        ),
        compiler_params=pltpu.CompilerParams(
            dimension_semantics=("arbitrary",)),
        cost_estimate=cost,
    )(states_p, table, b2r, w3p, b3p)

    return q_pad[:batch, :out_size]


def init_params(key):
    k_emb, k_w2, k_b2, k_w3, k_b3 = jax.random.split(key, 5)
    # Embedding ~ N(0, 1) (PyTorch default)
    emb = jax.random.normal(k_emb, (VOCAB, EMB), dtype=jnp.float32)
    # Linear layers ~ U(-1/sqrt(fan_in), 1/sqrt(fan_in)), stored as (in, out)
    lim2 = 1.0 / jnp.sqrt(96.0)
    w2 = jax.random.uniform(k_w2, (IN_FLAT, HID), minval=-lim2, maxval=lim2,
                            dtype=jnp.float32)
    b2 = jax.random.uniform(k_b2, (1, HID), minval=-lim2, maxval=lim2,
                            dtype=jnp.float32)
    lim3 = 1.0 / jnp.sqrt(float(HID))
    w3 = jax.random.uniform(k_w3, (HID, OUT), minval=-lim3, maxval=lim3,
                            dtype=jnp.float32)
    b3 = jax.random.uniform(k_b3, (1, OUT), minval=-lim3, maxval=lim3,
                            dtype=jnp.float32)
    return emb, w2, b2, w3, b3


def reference(states, emb, w2, b2, w3, b3):
    x = emb[states]                       # (B, SEQ, EMB)
    x = x.reshape(states.shape[0], -1)    # (B, 96)
    h = jnp.maximum(x @ w2 + b2, 0.0)
    return h @ w3 + b3


if __name__ == "__main__":
    key = jax.random.PRNGKey(0)
    k_params, k_states = jax.random.split(key)
    emb, w2, b2, w3, b3 = init_params(k_params)
    states = jax.random.randint(k_states, (BATCH, SEQ), 0, VOCAB, dtype=jnp.int32)

    q = discrete_critic_discrete_obs(states, emb, w2, b2, w3, b3)
    q = jax.block_until_ready(q)

    q_ref = reference(states, emb, w2, b2, w3, b3)
    assert q.shape == (BATCH, OUT)
    assert jnp.allclose(q, q_ref, atol=1e-4, rtol=1e-4), "mismatch vs reference"
    print("KERNEL_OK")
</pallas_src>

<mosaic_0001>
module attributes {stable_mosaic.version = 11 : i64} {
  func.func @_critic_kernel(%arg0: i32, %arg1: memref<8x12xi32, #tpu.memory_space<smem>>, %arg2: memref<384x64xf32, #tpu.memory_space<vmem>>, %arg3: memref<1x64xf32, #tpu.memory_space<vmem>>, %arg4: memref<64x128xf32, #tpu.memory_space<vmem>>, %arg5: memref<1x128xf32, #tpu.memory_space<vmem>>, %arg6: memref<8x128xf32, #tpu.memory_space<vmem>>) attributes {dimension_semantics = [#tpu.dimension_semantics<arbitrary>], iteration_bounds = array<i64: 1>, scalar_prefetch = 1 : i64, scratch_operands = 0 : i64, tpu.core_type = #tpu.core_type<tc>, window_params = [{pipeline_mode = #tpu.pipeline_mode<synchronous>, transform_indices = @transform_0, window_bounds = array<i64: 384, 64>}, {pipeline_mode = #tpu.pipeline_mode<synchronous>, transform_indices = @transform_1, window_bounds = array<i64: 1, 64>}, {pipeline_mode = #tpu.pipeline_mode<synchronous>, transform_indices = @transform_2, window_bounds = array<i64: 64, 128>}, {pipeline_mode = #tpu.pipeline_mode<synchronous>, transform_indices = @transform_3, window_bounds = array<i64: 1, 128>}, {pipeline_mode = #tpu.pipeline_mode<synchronous>, transform_indices = @transform_4, window_bounds = array<i64: 8, 128>}]} {
    %c0 = arith.constant 0 : index
    %c0_0 = arith.constant 0 : index
    %0 = vector.load %arg3[%c0, %c0_0] : memref<1x64xf32, #tpu.memory_space<vmem>>, vector<1x64xf32>
    %c0_1 = arith.constant 0 : index
    %c0_2 = arith.constant 0 : index
    %1 = memref.load %arg1[%c0_1, %c0_2] : memref<8x12xi32, #tpu.memory_space<smem>>
    %c0_i32 = arith.constant 0 : i32
    %2 = arith.addi %c0_i32, %1 : i32
    %3 = arith.index_cast %2 : i32 to index
    %c0_3 = arith.constant 0 : index
    %4 = vector.load %arg2[%3, %c0_3] : memref<384x64xf32, #tpu.memory_space<vmem>>, vector<1x64xf32>
    %5 = arith.addf %0, %4 : vector<1x64xf32>
    %c0_4 = arith.constant 0 : index
    %c1 = arith.constant 1 : index
    %6 = memref.load %arg1[%c0_4, %c1] : memref<8x12xi32, #tpu.memory_space<smem>>
    %c32_i32 = arith.constant 32 : i32
    %7 = arith.addi %c32_i32, %6 : i32
    %8 = arith.index_cast %7 : i32 to index
    %c0_5 = arith.constant 0 : index
    %9 = vector.load %arg2[%8, %c0_5] : memref<384x64xf32, #tpu.memory_space<vmem>>, vector<1x64xf32>
    %10 = arith.addf %5, %9 : vector<1x64xf32>
    %c0_6 = arith.constant 0 : index
    %c2 = arith.constant 2 : index
    %11 = memref.load %arg1[%c0_6, %c2] : memref<8x12xi32, #tpu.memory_space<smem>>
    %c64_i32 = arith.constant 64 : i32
    %12 = arith.addi %c64_i32, %11 : i32
    %13 = arith.index_cast %12 : i32 to index
    %c0_7 = arith.constant 0 : index
    %14 = vector.load %arg2[%13, %c0_7] : memref<384x64xf32, #tpu.memory_space<vmem>>, vector<1x64xf32>
    %15 = arith.addf %10, %14 : vector<1x64xf32>
    %c0_8 = arith.constant 0 : index
    %c3 = arith.constant 3 : index
    %16 = memref.load %arg1[%c0_8, %c3] : memref<8x12xi32, #tpu.memory_space<smem>>
    %c96_i32 = arith.constant 96 : i32
    %17 = arith.addi %c96_i32, %16 : i32
    %18 = arith.index_cast %17 : i32 to index
    %c0_9 = arith.constant 0 : index
    %19 = vector.load %arg2[%18, %c0_9] : memref<384x64xf32, #tpu.memory_space<vmem>>, vector<1x64xf32>
    %20 = arith.addf %15, %19 : vector<1x64xf32>
    %c0_10 = arith.constant 0 : index
    %c4 = arith.constant 4 : index
    %21 = memref.load %arg1[%c0_10, %c4] : memref<8x12xi32, #tpu.memory_space<smem>>
    %c128_i32 = arith.constant 128 : i32
    %22 = arith.addi %c128_i32, %21 : i32
    %23 = arith.index_cast %22 : i32 to index
    %c0_11 = arith.constant 0 : index
    %24 = vector.load %arg2[%23, %c0_11] : memref<384x64xf32, #tpu.memory_space<vmem>>, vector<1x64xf32>
    %25 = arith.addf %20, %24 : vector<1x64xf32>
    %c0_12 = arith.constant 0 : index
    %c5 = arith.constant 5 : index
    %26 = memref.load %arg1[%c0_12, %c5] : memref<8x12xi32, #tpu.memory_space<smem>>
    %c160_i32 = arith.constant 160 : i32
    %27 = arith.addi %c160_i32, %26 : i32
    %28 = arith.index_cast %27 : i32 to index
    %c0_13 = arith.constant 0 : index
    %29 = vector.load %arg2[%28, %c0_13] : memref<384x64xf32, #tpu.memory_space<vmem>>, vector<1x64xf32>
    %30 = arith.addf %25, %29 : vector<1x64xf32>
    %c0_14 = arith.constant 0 : index
    %c6 = arith.constant 6 : index
    %31 = memref.load %arg1[%c0_14, %c6] : memref<8x12xi32, #tpu.memory_space<smem>>
    %c192_i32 = arith.constant 192 : i32
    %32 = arith.addi %c192_i32, %31 : i32
    %33 = arith.index_cast %32 : i32 to index
    %c0_15 = arith.constant 0 : index
    %34 = vector.load %arg2[%33, %c0_15] : memref<384x64xf32, #tpu.memory_space<vmem>>, vector<1x64xf32>
    %35 = arith.addf %30, %34 : vector<1x64xf32>
    %c0_16 = arith.constant 0 : index
    %c7 = arith.constant 7 : index
    %36 = memref.load %arg1[%c0_16, %c7] : memref<8x12xi32, #tpu.memory_space<smem>>
    %c224_i32 = arith.constant 224 : i32
    %37 = arith.addi %c224_i32, %36 : i32
    %38 = arith.index_cast %37 : i32 to index
    %c0_17 = arith.constant 0 : index
    %39 = vector.load %arg2[%38, %c0_17] : memref<384x64xf32, #tpu.memory_space<vmem>>, vector<1x64xf32>
    %40 = arith.addf %35, %39 : vector<1x64xf32>
    %c0_18 = arith.constant 0 : index
    %c8 = arith.constant 8 : index
    %41 = memref.load %arg1[%c0_18, %c8] : memref<8x12xi32, #tpu.memory_space<smem>>
    %c256_i32 = arith.constant 256 : i32
    %42 = arith.addi %c256_i32, %41 : i32
    %43 = arith.index_cast %42 : i32 to index
    %c0_19 = arith.constant 0 : index
    %44 = vector.load %arg2[%43, %c0_19] : memref<384x64xf32, #tpu.memory_space<vmem>>, vector<1x64xf32>
    %45 = arith.addf %40, %44 : vector<1x64xf32>
    %c0_20 = arith.constant 0 : index
    %c9 = arith.constant 9 : index
    %46 = memref.load %arg1[%c0_20, %c9] : memref<8x12xi32, #tpu.memory_space<smem>>
    %c288_i32 = arith.constant 288 : i32
    %47 = arith.addi %c288_i32, %46 : i32
    %48 = arith.index_cast %47 : i32 to index
    %c0_21 = arith.constant 0 : index
    %49 = vector.load %arg2[%48, %c0_21] : memref<384x64xf32, #tpu.memory_space<vmem>>, vector<1x64xf32>
    %50 = arith.addf %45, %49 : vector<1x64xf32>
    %c0_22 = arith.constant 0 : index
    %c10 = arith.constant 10 : index
    %51 = memref.load %arg1[%c0_22, %c10] : memref<8x12xi32, #tpu.memory_space<smem>>
    %c320_i32 = arith.constant 320 : i32
    %52 = arith.addi %c320_i32, %51 : i32
    %53 = arith.index_cast %52 : i32 to index
    %c0_23 = arith.constant 0 : index
    %54 = vector.load %arg2[%53, %c0_23] : memref<384x64xf32, #tpu.memory_space<vmem>>, vector<1x64xf32>
    %55 = arith.addf %50, %54 : vector<1x64xf32>
    %c0_24 = arith.constant 0 : index
    %c11 = arith.constant 11 : index
    %56 = memref.load %arg1[%c0_24, %c11] : memref<8x12xi32, #tpu.memory_space<smem>>
    %c352_i32 = arith.constant 352 : i32
    %57 = arith.addi %c352_i32, %56 : i32
    %58 = arith.index_cast %57 : i32 to index
    %c0_25 = arith.constant 0 : index
    %59 = vector.load %arg2[%58, %c0_25] : memref<384x64xf32, #tpu.memory_space<vmem>>, vector<1x64xf32>
    %60 = arith.addf %55, %59 : vector<1x64xf32>
    %c1_26 = arith.constant 1 : index
    %c0_27 = arith.constant 0 : index
    %61 = memref.load %arg1[%c1_26, %c0_27] : memref<8x12xi32, #tpu.memory_space<smem>>
    %c0_i32_28 = arith.constant 0 : i32
    %62 = arith.addi %c0_i32_28, %61 : i32
    %63 = arith.index_cast %62 : i32 to index
    %c0_29 = arith.constant 0 : index
    %64 = vector.load %arg2[%63, %c0_29] : memref<384x64xf32, #tpu.memory_space<vmem>>, vector<1x64xf32>
    %65 = arith.addf %0, %64 : vector<1x64xf32>
    %c1_30 = arith.constant 1 : index
    %c1_31 = arith.constant 1 : index
    %66 = memref.load %arg1[%c1_30, %c1_31] : memref<8x12xi32, #tpu.memory_space<smem>>
    %c32_i32_32 = arith.constant 32 : i32
    %67 = arith.addi %c32_i32_32, %66 : i32
    %68 = arith.index_cast %67 : i32 to index
    %c0_33 = arith.constant 0 : index
    %69 = vector.load %arg2[%68, %c0_33] : memref<384x64xf32, #tpu.memory_space<vmem>>, vector<1x64xf32>
    %70 = arith.addf %65, %69 : vector<1x64xf32>
    %c1_34 = arith.constant 1 : index
    %c2_35 = arith.constant 2 : index
    %71 = memref.load %arg1[%c1_34, %c2_35] : memref<8x12xi32, #tpu.memory_space<smem>>
    %c64_i32_36 = arith.constant 64 : i32
    %72 = arith.addi %c64_i32_36, %71 : i32
    %73 = arith.index_cast %72 : i32 to index
    %c0_37 = arith.constant 0 : index
    %74 = vector.load %arg2[%73, %c0_37] : memref<384x64xf32, #tpu.memory_space<vmem>>, vector<1x64xf32>
    %75 = arith.addf %70, %74 : vector<1x64xf32>
    %c1_38 = arith.constant 1 : index
    %c3_39 = arith.constant 3 : index
    %76 = memref.load %arg1[%c1_38, %c3_39] : memref<8x12xi32, #tpu.memory_space<smem>>
    %c96_i32_40 = arith.constant 96 : i32
    %77 = arith.addi %c96_i32_40, %76 : i32
    %78 = arith.index_cast %77 : i32 to index
    %c0_41 = arith.constant 0 : index
    %79 = vector.load %arg2[%78, %c0_41] : memref<384x64xf32, #tpu.memory_space<vmem>>, vector<1x64xf32>
    %80 = arith.addf %75, %79 : vector<1x64xf32>
    %c1_42 = arith.constant 1 : index
    %c4_43 = arith.constant 4 : index
    %81 = memref.load %arg1[%c1_42, %c4_43] : memref<8x12xi32, #tpu.memory_space<smem>>
    %c128_i32_44 = arith.constant 128 : i32
    %82 = arith.addi %c128_i32_44, %81 : i32
    %83 = arith.index_cast %82 : i32 to index
    %c0_45 = arith.constant 0 : index
    %84 = vector.load %arg2[%83, %c0_45] : memref<384x64xf32, #tpu.memory_space<vmem>>, vector<1x64xf32>
    %85 = arith.addf %80, %84 : vector<1x64xf32>
    %c1_46 = arith.constant 1 : index
    %c5_47 = arith.constant 5 : index
    %86 = memref.load %arg1[%c1_46, %c5_47] : memref<8x12xi32, #tpu.memory_space<smem>>
    %c160_i32_48 = arith.constant 160 : i32
    %87 = arith.addi %c160_i32_48, %86 : i32
    %88 = arith.index_cast %87 : i32 to index
    %c0_49 = arith.constant 0 : index
    %89 = vector.load %arg2[%88, %c0_49] : memref<384x64xf32, #tpu.memory_space<vmem>>, vector<1x64xf32>
    %90 = arith.addf %85, %89 : vector<1x64xf32>
    %c1_50 = arith.constant 1 : index
    %c6_51 = arith.constant 6 : index
    %91 = memref.load %arg1[%c1_50, %c6_51] : memref<8x12xi32, #tpu.memory_space<smem>>
    %c192_i32_52 = arith.constant 192 : i32
    %92 = arith.addi %c192_i32_52, %91 : i32
    %93 = arith.index_cast %92 : i32 to index
    %c0_53 = arith.constant 0 : index
    %94 = vector.load %arg2[%93, %c0_53] : memref<384x64xf32, #tpu.memory_space<vmem>>, vector<1x64xf32>
    %95 = arith.addf %90, %94 : vector<1x64xf32>
    %c1_54 = arith.constant 1 : index
    %c7_55 = arith.constant 7 : index
    %96 = memref.load %arg1[%c1_54, %c7_55] : memref<8x12xi32, #tpu.memory_space<smem>>
    %c224_i32_56 = arith.constant 224 : i32
    %97 = arith.addi %c224_i32_56, %96 : i32
    %98 = arith.index_cast %97 : i32 to index
    %c0_57 = arith.constant 0 : index
    %99 = vector.load %arg2[%98, %c0_57] : memref<384x64xf32, #tpu.memory_space<vmem>>, vector<1x64xf32>
    %100 = arith.addf %95, %99 : vector<1x64xf32>
    %c1_58 = arith.constant 1 : index
    %c8_59 = arith.constant 8 : index
    %101 = memref.load %arg1[%c1_58, %c8_59] : memref<8x12xi32, #tpu.memory_space<smem>>
    %c256_i32_60 = arith.constant 256 : i32
    %102 = arith.addi %c256_i32_60, %101 : i32
    %103 = arith.index_cast %102 : i32 to index
    %c0_61 = arith.constant 0 : index
    %104 = vector.load %arg2[%103, %c0_61] : memref<384x64xf32, #tpu.memory_space<vmem>>, vector<1x64xf32>
    %105 = arith.addf %100, %104 : vector<1x64xf32>
    %c1_62 = arith.constant 1 : index
    %c9_63 = arith.constant 9 : index
    %106 = memref.load %arg1[%c1_62, %c9_63] : memref<8x12xi32, #tpu.memory_space<smem>>
    %c288_i32_64 = arith.constant 288 : i32
    %107 = arith.addi %c288_i32_64, %106 : i32
    %108 = arith.index_cast %107 : i32 to index
    %c0_65 = arith.constant 0 : index
    %109 = vector.load %arg2[%108, %c0_65] : memref<384x64xf32, #tpu.memory_space<vmem>>, vector<1x64xf32>
    %110 = arith.addf %105, %109 : vector<1x64xf32>
    %c1_66 = arith.constant 1 : index
    %c10_67 = arith.constant 10 : index
    %111 = memref.load %arg1[%c1_66, %c10_67] : memref<8x12xi32, #tpu.memory_space<smem>>
    %c320_i32_68 = arith.constant 320 : i32
    %112 = arith.addi %c320_i32_68, %111 : i32
    %113 = arith.index_cast %112 : i32 to index
    %c0_69 = arith.constant 0 : index
    %114 = vector.load %arg2[%113, %c0_69] : memref<384x64xf32, #tpu.memory_space<vmem>>, vector<1x64xf32>
    %115 = arith.addf %110, %114 : vector<1x64xf32>
    %c1_70 = arith.constant 1 : index
    %c11_71 = arith.constant 11 : index
    %116 = memref.load %arg1[%c1_70, %c11_71] : memref<8x12xi32, #tpu.memory_space<smem>>
    %c352_i32_72 = arith.constant 352 : i32
    %117 = arith.addi %c352_i32_72, %116 : i32
    %118 = arith.index_cast %117 : i32 to index
    %c0_73 = arith.constant 0 : index
    %119 = vector.load %arg2[%118, %c0_73] : memref<384x64xf32, #tpu.memory_space<vmem>>, vector<1x64xf32>
    %120 = arith.addf %115, %119 : vector<1x64xf32>
    %c2_74 = arith.constant 2 : index
    %c0_75 = arith.constant 0 : index
    %121 = memref.load %arg1[%c2_74, %c0_75] : memref<8x12xi32, #tpu.memory_space<smem>>
    %c0_i32_76 = arith.constant 0 : i32
    %122 = arith.addi %c0_i32_76, %121 : i32
    %123 = arith.index_cast %122 : i32 to index
    %c0_77 = arith.constant 0 : index
    %124 = vector.load %arg2[%123, %c0_77] : memref<384x64xf32, #tpu.memory_space<vmem>>, vector<1x64xf32>
    %125 = arith.addf %0, %124 : vector<1x64xf32>
    %c2_78 = arith.constant 2 : index
    %c1_79 = arith.constant 1 : index
    %126 = memref.load %arg1[%c2_78, %c1_79] : memref<8x12xi32, #tpu.memory_space<smem>>
    %c32_i32_80 = arith.constant 32 : i32
    %127 = arith.addi %c32_i32_80, %126 : i32
    %128 = arith.index_cast %127 : i32 to index
    %c0_81 = arith.constant 0 : index
    %129 = vector.load %arg2[%128, %c0_81] : memref<384x64xf32, #tpu.memory_space<vmem>>, vector<1x64xf32>
    %130 = arith.addf %125, %129 : vector<1x64xf32>
    %c2_82 = arith.constant 2 : index
    %c2_83 = arith.constant 2 : index
    %131 = memref.load %arg1[%c2_82, %c2_83] : memref<8x12xi32, #tpu.memory_space<smem>>
    %c64_i32_84 = arith.constant 64 : i32
    %132 = arith.addi %c64_i32_84, %131 : i32
    %133 = arith.index_cast %132 : i32 to index
    %c0_85 = arith.constant 0 : index
    %134 = vector.load %arg2[%133, %c0_85] : memref<384x64xf32, #tpu.memory_space<vmem>>, vector<1x64xf32>
    %135 = arith.addf %130, %134 : vector<1x64xf32>
    %c2_86 = arith.constant 2 : index
    %c3_87 = arith.constant 3 : index
    %136 = memref.load %arg1[%c2_86, %c3_87] : memref<8x12xi32, #tpu.memory_space<smem>>
    %c96_i32_88 = arith.constant 96 : i32
    %137 = arith.addi %c96_i32_88, %136 : i32
    %138 = arith.index_cast %137 : i32 to index
    %c0_89 = arith.constant 0 : index
    %139 = vector.load %arg2[%138, %c0_89] : memref<384x64xf32, #tpu.memory_space<vmem>>, vector<1x64xf32>
    %140 = arith.addf %135, %139 : vector<1x64xf32>
    %c2_90 = arith.constant 2 : index
    %c4_91 = arith.constant 4 : index
    %141 = memref.load %arg1[%c2_90, %c4_91] : memref<8x12xi32, #tpu.memory_space<smem>>
    %c128_i32_92 = arith.constant 128 : i32
    %142 = arith.addi %c128_i32_92, %141 : i32
    %143 = arith.index_cast %142 : i32 to index
    %c0_93 = arith.constant 0 : index
    %144 = vector.load %arg2[%143, %c0_93] : memref<384x64xf32, #tpu.memory_space<vmem>>, vector<1x64xf32>
    %145 = arith.addf %140, %144 : vector<1x64xf32>
    %c2_94 = arith.constant 2 : index
    %c5_95 = arith.constant 5 : index
    %146 = memref.load %arg1[%c2_94, %c5_95] : memref<8x12xi32, #tpu.memory_space<smem>>
    %c160_i32_96 = arith.constant 160 : i32
    %147 = arith.addi %c160_i32_96, %146 : i32
    %148 = arith.index_cast %147 : i32 to index
    %c0_97 = arith.constant 0 : index
    %149 = vector.load %arg2[%148, %c0_97] : memref<384x64xf32, #tpu.memory_space<vmem>>, vector<1x64xf32>
    %150 = arith.addf %145, %149 : vector<1x64xf32>
    %c2_98 = arith.constant 2 : index
    %c6_99 = arith.constant 6 : index
    %151 = memref.load %arg1[%c2_98, %c6_99] : memref<8x12xi32, #tpu.memory_space<smem>>
    %c192_i32_100 = arith.constant 192 : i32
    %152 = arith.addi %c192_i32_100, %151 : i32
    %153 = arith.index_cast %152 : i32 to index
    %c0_101 = arith.constant 0 : index
    %154 = vector.load %arg2[%153, %c0_101] : memref<384x64xf32, #tpu.memory_space<vmem>>, vector<1x64xf32>
    %155 = arith.addf %150, %154 : vector<1x64xf32>
    %c2_102 = arith.constant 2 : index
    %c7_103 = arith.constant 7 : index
    %156 = memref.load %arg1[%c2_102, %c7_103] : memref<8x12xi32, #tpu.memory_space<smem>>
    %c224_i32_104 = arith.constant 224 : i32
    %157 = arith.addi %c224_i32_104, %156 : i32
    %158 = arith.index_cast %157 : i32 to index
    %c0_105 = arith.constant 0 : index
    %159 = vector.load %arg2[%158, %c0_105] : memref<384x64xf32, #tpu.memory_space<vmem>>, vector<1x64xf32>
    %160 = arith.addf %155, %159 : vector<1x64xf32>
    %c2_106 = arith.constant 2 : index
    %c8_107 = arith.constant 8 : index
    %161 = memref.load %arg1[%c2_106, %c8_107] : memref<8x12xi32, #tpu.memory_space<smem>>
    %c256_i32_108 = arith.constant 256 : i32
    %162 = arith.addi %c256_i32_108, %161 : i32
    %163 = arith.index_cast %162 : i32 to index
    %c0_109 = arith.constant 0 : index
    %164 = vector.load %arg2[%163, %c0_109] : memref<384x64xf32, #tpu.memory_space<vmem>>, vector<1x64xf32>
    %165 = arith.addf %160, %164 : vector<1x64xf32>
    %c2_110 = arith.constant 2 : index
    %c9_111 = arith.constant 9 : index
    %166 = memref.load %arg1[%c2_110, %c9_111] : memref<8x12xi32, #tpu.memory_space<smem>>
    %c288_i32_112 = arith.constant 288 : i32
    %167 = arith.addi %c288_i32_112, %166 : i32
    %168 = arith.index_cast %167 : i32 to index
    %c0_113 = arith.constant 0 : index
    %169 = vector.load %arg2[%168, %c0_113] : memref<384x64xf32, #tpu.memory_space<vmem>>, vector<1x64xf32>
    %170 = arith.addf %165, %169 : vector<1x64xf32>
    %c2_114 = arith.constant 2 : index
    %c10_115 = arith.constant 10 : index
    %171 = memref.load %arg1[%c2_114, %c10_115] : memref<8x12xi32, #tpu.memory_space<smem>>
    %c320_i32_116 = arith.constant 320 : i32
    %172 = arith.addi %c320_i32_116, %171 : i32
    %173 = arith.index_cast %172 : i32 to index
    %c0_117 = arith.constant 0 : index
    %174 = vector.load %arg2[%173, %c0_117] : memref<384x64xf32, #tpu.memory_space<vmem>>, vector<1x64xf32>
    %175 = arith.addf %170, %174 : vector<1x64xf32>
    %c2_118 = arith.constant 2 : index
    %c11_119 = arith.constant 11 : index
    %176 = memref.load %arg1[%c2_118, %c11_119] : memref<8x12xi32, #tpu.memory_space<smem>>
    %c352_i32_120 = arith.constant 352 : i32
    %177 = arith.addi %c352_i32_120, %176 : i32
    %178 = arith.index_cast %177 : i32 to index
    %c0_121 = arith.constant 0 : index
    %179 = vector.load %arg2[%178, %c0_121] : memref<384x64xf32, #tpu.memory_space<vmem>>, vector<1x64xf32>
    %180 = arith.addf %175, %179 : vector<1x64xf32>
    %c3_122 = arith.constant 3 : index
    %c0_123 = arith.constant 0 : index
    %181 = memref.load %arg1[%c3_122, %c0_123] : memref<8x12xi32, #tpu.memory_space<smem>>
    %c0_i32_124 = arith.constant 0 : i32
    %182 = arith.addi %c0_i32_124, %181 : i32
    %183 = arith.index_cast %182 : i32 to index
    %c0_125 = arith.constant 0 : index
    %184 = vector.load %arg2[%183, %c0_125] : memref<384x64xf32, #tpu.memory_space<vmem>>, vector<1x64xf32>
    %185 = arith.addf %0, %184 : vector<1x64xf32>
    %c3_126 = arith.constant 3 : index
    %c1_127 = arith.constant 1 : index
    %186 = memref.load %arg1[%c3_126, %c1_127] : memref<8x12xi32, #tpu.memory_space<smem>>
    %c32_i32_128 = arith.constant 32 : i32
    %187 = arith.addi %c32_i32_128, %186 : i32
    %188 = arith.index_cast %187 : i32 to index
    %c0_129 = arith.constant 0 : index
    %189 = vector.load %arg2[%188, %c0_129] : memref<384x64xf32, #tpu.memory_space<vmem>>, vector<1x64xf32>
    %190 = arith.addf %185, %189 : vector<1x64xf32>
    %c3_130 = arith.constant 3 : index
    %c2_131 = arith.constant 2 : index
    %191 = memref.load %arg1[%c3_130, %c2_131] : memref<8x12xi32, #tpu.memory_space<smem>>
    %c64_i32_132 = arith.constant 64 : i32
    %192 = arith.addi %c64_i32_132, %191 : i32
    %193 = arith.index_cast %192 : i32 to index
    %c0_133 = arith.constant 0 : index
    %194 = vector.load %arg2[%193, %c0_133] : memref<384x64xf32, #tpu.memory_space<vmem>>, vector<1x64xf32>
    %195 = arith.addf %190, %194 : vector<1x64xf32>
    %c3_134 = arith.constant 3 : index
    %c3_135 = arith.constant 3 : index
    %196 = memref.load %arg1[%c3_134, %c3_135] : memref<8x12xi32, #tpu.memory_space<smem>>
    %c96_i32_136 = arith.constant 96 : i32
    %197 = arith.addi %c96_i32_136, %196 : i32
    %198 = arith.index_cast %197 : i32 to index
    %c0_137 = arith.constant 0 : index
    %199 = vector.load %arg2[%198, %c0_137] : memref<384x64xf32, #tpu.memory_space<vmem>>, vector<1x64xf32>
    %200 = arith.addf %195, %199 : vector<1x64xf32>
    %c3_138 = arith.constant 3 : index
    %c4_139 = arith.constant 4 : index
    %201 = memref.load %arg1[%c3_138, %c4_139] : memref<8x12xi32, #tpu.memory_space<smem>>
    %c128_i32_140 = arith.constant 128 : i32
    %202 = arith.addi %c128_i32_140, %201 : i32
    %203 = arith.index_cast %202 : i32 to index
    %c0_141 = arith.constant 0 : index
    %204 = vector.load %arg2[%203, %c0_141] : memref<384x64xf32, #tpu.memory_space<vmem>>, vector<1x64xf32>
    %205 = arith.addf %200, %204 : vector<1x64xf32>
    %c3_142 = arith.constant 3 : index
    %c5_143 = arith.constant 5 : index
    %206 = memref.load %arg1[%c3_142, %c5_143] : memref<8x12xi32, #tpu.memory_space<smem>>
    %c160_i32_144 = arith.constant 160 : i32
    %207 = arith.addi %c160_i32_144, %206 : i32
    %208 = arith.index_cast %207 : i32 to index
    %c0_145 = arith.constant 0 : index
    %209 = vector.load %arg2[%208, %c0_145] : memref<384x64xf32, #tpu.memory_space<vmem>>, vector<1x64xf32>
    %210 = arith.addf %205, %209 : vector<1x64xf32>
    %c3_146 = arith.constant 3 : index
    %c6_147 = arith.constant 6 : index
    %211 = memref.load %arg1[%c3_146, %c6_147] : memref<8x12xi32, #tpu.memory_space<smem>>
    %c192_i32_148 = arith.constant 192 : i32
    %212 = arith.addi %c192_i32_148, %211 : i32
    %213 = arith.index_cast %212 : i32 to index
    %c0_149 = arith.constant 0 : index
    %214 = vector.load %arg2[%213, %c0_149] : memref<384x64xf32, #tpu.memory_space<vmem>>, vector<1x64xf32>
    %215 = arith.addf %210, %214 : vector<1x64xf32>
    %c3_150 = arith.constant 3 : index
    %c7_151 = arith.constant 7 : index
    %216 = memref.load %arg1[%c3_150, %c7_151] : memref<8x12xi32, #tpu.memory_space<smem>>
    %c224_i32_152 = arith.constant 224 : i32
    %217 = arith.addi %c224_i32_152, %216 : i32
    %218 = arith.index_cast %217 : i32 to index
    %c0_153 = arith.constant 0 : index
    %219 = vector.load %arg2[%218, %c0_153] : memref<384x64xf32, #tpu.memory_space<vmem>>, vector<1x64xf32>
    %220 = arith.addf %215, %219 : vector<1x64xf32>
    %c3_154 = arith.constant 3 : index
    %c8_155 = arith.constant 8 : index
    %221 = memref.load %arg1[%c3_154, %c8_155] : memref<8x12xi32, #tpu.memory_space<smem>>
    %c256_i32_156 = arith.constant 256 : i32
    %222 = arith.addi %c256_i32_156, %221 : i32
    %223 = arith.index_cast %222 : i32 to index
    %c0_157 = arith.constant 0 : index
    %224 = vector.load %arg2[%223, %c0_157] : memref<384x64xf32, #tpu.memory_space<vmem>>, vector<1x64xf32>
    %225 = arith.addf %220, %224 : vector<1x64xf32>
    %c3_158 = arith.constant 3 : index
    %c9_159 = arith.constant 9 : index
    %226 = memref.load %arg1[%c3_158, %c9_159] : memref<8x12xi32, #tpu.memory_space<smem>>
    %c288_i32_160 = arith.constant 288 : i32
    %227 = arith.addi %c288_i32_160, %226 : i32
    %228 = arith.index_cast %227 : i32 to index
    %c0_161 = arith.constant 0 : index
    %229 = vector.load %arg2[%228, %c0_161] : memref<384x64xf32, #tpu.memory_space<vmem>>, vector<1x64xf32>
    %230 = arith.addf %225, %229 : vector<1x64xf32>
    %c3_162 = arith.constant 3 : index
    %c10_163 = arith.constant 10 : index
    %231 = memref.load %arg1[%c3_162, %c10_163] : memref<8x12xi32, #tpu.memory_space<smem>>
    %c320_i32_164 = arith.constant 320 : i32
    %232 = arith.addi %c320_i32_164, %231 : i32
    %233 = arith.index_cast %232 : i32 to index
    %c0_165 = arith.constant 0 : index
    %234 = vector.load %arg2[%233, %c0_165] : memref<384x64xf32, #tpu.memory_space<vmem>>, vector<1x64xf32>
    %235 = arith.addf %230, %234 : vector<1x64xf32>
    %c3_166 = arith.constant 3 : index
    %c11_167 = arith.constant 11 : index
    %236 = memref.load %arg1[%c3_166, %c11_167] : memref<8x12xi32, #tpu.memory_space<smem>>
    %c352_i32_168 = arith.constant 352 : i32
    %237 = arith.addi %c352_i32_168, %236 : i32
    %238 = arith.index_cast %237 : i32 to index
    %c0_169 = arith.constant 0 : index
    %239 = vector.load %arg2[%238, %c0_169] : memref<384x64xf32, #tpu.memory_space<vmem>>, vector<1x64xf32>
    %240 = arith.addf %235, %239 : vector<1x64xf32>
    %cst = arith.constant 0.000000e+00 : f32
    %241 = vector.broadcast %cst : f32 to vector<1x64xf32>
    %cst_170 = arith.constant 0.000000e+00 : f32
    %242 = vector.broadcast %cst_170 : f32 to vector<1x64xf32>
    %cst_171 = arith.constant 0.000000e+00 : f32
    %243 = vector.broadcast %cst_171 : f32 to vector<1x64xf32>
    %cst_172 = arith.constant 0.000000e+00 : f32
    %244 = vector.broadcast %cst_172 : f32 to vector<1x64xf32>
    %245 = tpu.concatenate %60, %120, %180, %240, %241, %242, %243, %244 in 0 : vector<1x64xf32>, vector<1x64xf32>, vector<1x64xf32>, vector<1x64xf32>, vector<1x64xf32>, vector<1x64xf32>, vector<1x64xf32>, vector<1x64xf32> -> vector<8x64xf32>
    %cst_173 = arith.constant 0.000000e+00 : f32
    %246 = vector.broadcast %cst_173 : f32 to vector<8x64xf32>
    %247 = arith.maximumf %245, %246 : vector<8x64xf32>
    %c0_174 = arith.constant 0 : index
    %c0_175 = arith.constant 0 : index
    %248 = vector.load %arg4[%c0_174, %c0_175] : memref<64x128xf32, #tpu.memory_space<vmem>>, vector<64x128xf32>
    %cst_176 = arith.constant dense<0.000000e+00> : vector<8x128xf32>
    %249 = tpu.matmul %247, %248, %cst_176 {dimension_numbers = #tpu.dot_dimension_numbers<[1], [0], [0], [1], [0, 0, 1, 1], [], []>} : vector<8x64xf32>, vector<64x128xf32>, vector<8x128xf32> -> vector<8x128xf32>
    %c0_177 = arith.constant 0 : index
    %c0_178 = arith.constant 0 : index
    %250 = vector.load %arg5[%c0_177, %c0_178] : memref<1x128xf32, #tpu.memory_space<vmem>>, vector<1x128xf32>
    %251 = vector.broadcast %250 : vector<1x128xf32> to vector<8x128xf32>
    %252 = arith.addf %249, %251 : vector<8x128xf32>
    %c0_179 = arith.constant 0 : index
    %c0_180 = arith.constant 0 : index
    %253 = vector.load %arg6[%c0_179, %c0_180] : memref<8x128xf32, #tpu.memory_space<vmem>>, vector<8x128xf32>
    tpu.vector_store %arg6[%c0_179, %c0_180], %252 {strides = array<i32>} : memref<8x128xf32, #tpu.memory_space<vmem>>, vector<8x128xf32>,
    return
  }
  func.func @transform_0(%arg0: i32, %arg1: memref<8x12xi32, #tpu.memory_space<smem>>) -> (i32, i32) {
    %c0_i32 = arith.constant 0 : i32
    %c0_i32_0 = arith.constant 0 : i32
    %c0_i32_1 = arith.constant 0 : i32
    return %c0_i32, %c0_i32_0 : i32, i32
  }
  func.func @transform_1(%arg0: i32, %arg1: memref<8x12xi32, #tpu.memory_space<smem>>) -> (i32, i32) {
    %c0_i32 = arith.constant 0 : i32
    %c0_i32_0 = arith.constant 0 : i32
    %c0_i32_1 = arith.constant 0 : i32
    return %c0_i32, %c0_i32_0 : i32, i32
  }
  func.func @transform_2(%arg0: i32, %arg1: memref<8x12xi32, #tpu.memory_space<smem>>) -> (i32, i32) {
    %c0_i32 = arith.constant 0 : i32
    %c0_i32_0 = arith.constant 0 : i32
    %c0_i32_1 = arith.constant 0 : i32
    return %c0_i32, %c0_i32_0 : i32, i32
  }
  func.func @transform_3(%arg0: i32, %arg1: memref<8x12xi32, #tpu.memory_space<smem>>) -> (i32, i32) {
    %c0_i32 = arith.constant 0 : i32
    %c0_i32_0 = arith.constant 0 : i32
    %c0_i32_1 = arith.constant 0 : i32
    return %c0_i32, %c0_i32_0 : i32, i32
  }
  func.func @transform_4(%arg0: i32, %arg1: memref<8x12xi32, #tpu.memory_space<smem>>) -> (i32, i32) {
    %c0_i32 = arith.constant 0 : i32
    %c0_i32_0 = arith.constant 0 : i32
    %c0_i32_1 = arith.constant 0 : i32
    return %c0_i32, %c0_i32_0 : i32, i32
  }
}

</mosaic_0001>

<llo_original>
// kernel: tpu_custom_call.1
$region0: #{tpu_custom_call.1}
  #allocation0 [shape = 'u32[]', space=smem, size = 0x4, offset = 0x4, fixed_abs, tag = 'smem constant byte address 0x4 - core index']
  #allocation1 [shape = 'u32[72,128]{1,0:T(1,128)}', space=vmem, size = 0x9000, scoped, tag = 'internal scratch']
  #allocation2 [shape = 's32[1]{0}', space=sflag, size = 0x4, scoped, tag = 'scoped memory for tpu_custom_call.1']
  #allocation3 [shape = 'u8[4096]{0}', space=smem, size = 0x1000, scoped, tag = 'prefetched SMEM operand 0']
  %s0 = inlined_call_operand.vmem [shape: s32[8,12], index: 0, kind: input, shape index: {}]
  %s1 = inlined_call_operand.vmem [shape: f32[384,64], index: 1, kind: input, shape index: {}]
  %s2 = inlined_call_operand.vmem [shape: f32[1,64], index: 2, kind: input, shape index: {}]
  %s3 = inlined_call_operand.vmem [shape: f32[64,128], index: 3, kind: input, shape index: {}]
  %s4 = inlined_call_operand.vmem [shape: f32[1,128], index: 4, kind: input, shape index: {}]
  %s5 = inlined_call_operand.hbm [shape: f32[8,128], index: 5, kind: output, shape index: {}]
  %s6 = sld [smem:[#allocation0]]
  $region26: #{tpu_custom_call.1} parent=0
    _
  %s8 = ssub.s32 1, %s6
  %s9 = scalar_select 0, %s8, %s6
  %s11 = sshll.u32 %s0, 4
  %s12 = int_to_ptr.vmem [resolvable:$true] %s11
  %14 = dma.vmem_to_smem %s12, 128, [#allocation3], [#allocation2]
  %16 = dma.done [#allocation2], 128
  %17 = sfence
  $region1: #{tpu_custom_call.1} parent=0
    #allocation4 [shape = 'u8[4096]{0}', space=vmem, size = 0x1000, scoped, tag = 'output window, operand 0, single buffered']
    #allocation5 [shape = 's32[1]{0}', space=sflag, size = 0x4, scoped, tag = 'scoped memory for tpu_custom_call.1']
    %18 = vsyncpa [#allocation5], 0
    // Predicated region
    $region2: #{tpu_custom_call.1} parent=1 // pred_check
      _
    $region3: #{tpu_custom_call.1} parent=1 // pred_check_branch
      %20 = sbr.rel (0) target = $region5
    $region4: #{tpu_custom_call.1} parent=1 // pred_region
      _
    $region5: #{tpu_custom_call.1} parent=1 // pred_fallthru
      _
    // Predicated region
    $region6: #{tpu_custom_call.1} parent=1 // pred_check
      _
    $region7: #{tpu_custom_call.1} parent=1 // pred_check_branch
      %22 = sbr.rel (0) target = $region9
    $region8: #{tpu_custom_call.1} parent=1 // pred_region
      _
    $region9: #{tpu_custom_call.1} parent=1 // pred_fallthru
      _
    // Predicated region
    $region10: #{tpu_custom_call.1} parent=1 // pred_check
      _
    $region11: #{tpu_custom_call.1} parent=1 // pred_check_branch
      %24 = sbr.rel (0) target = $region13
    $region12: #{tpu_custom_call.1} parent=1 // pred_region
      _
    $region13: #{tpu_custom_call.1} parent=1 // pred_fallthru
      _
    // Predicated region
    $region14: #{tpu_custom_call.1} parent=1 // pred_check
      _
    $region15: #{tpu_custom_call.1} parent=1 // pred_check_branch
      %26 = sbr.rel (0) target = $region17
    $region16: #{tpu_custom_call.1} parent=1 // pred_region
      _
    $region17: #{tpu_custom_call.1} parent=1 // pred_fallthru
      _
    %v27 = vld [vmem:[%s2] sm:$0x1]
    %s28 = sld [smem:[#allocation3]]
    %s29 = scalar_lea.vmem %s1, %s28
    %v30 = vld [vmem:[%s29] sm:$0x1]
    %v31 = vadd.f32 %v27, %v30
    %s32 = sld [smem:[#allocation3 + $0x1]]
    %s33 = sadd.s32 %s32, 32
    %s34 = scalar_lea.vmem %s1, %s33
    %v35 = vld [vmem:[%s34] sm:$0x1]
    %v36 = vadd.f32 %v31, %v35
    %s37 = sld [smem:[#allocation3 + $0x2]]
    %s38 = sadd.s32 %s37, 64
    %s39 = scalar_lea.vmem %s1, %s38
    %v40 = vld [vmem:[%s39] sm:$0x1]
    %v41 = vadd.f32 %v36, %v40
    %s42 = sld [smem:[#allocation3 + $0x3]]
    %s43 = sadd.s32 %s42, 96
    %s44 = scalar_lea.vmem %s1, %s43
    %v45 = vld [vmem:[%s44] sm:$0x1]
    %v46 = vadd.f32 %v41, %v45
    %s47 = sld [smem:[#allocation3 + $0x4]]
    %s48 = sadd.s32 %s47, 128
    %s49 = scalar_lea.vmem %s1, %s48
    %v50 = vld [vmem:[%s49] sm:$0x1]
    %v51 = vadd.f32 %v46, %v50
    %s52 = sld [smem:[#allocation3 + $0x5]]
    %s53 = sadd.s32 %s52, 160
    %s54 = scalar_lea.vmem %s1, %s53
    %v55 = vld [vmem:[%s54] sm:$0x1]
    %v56 = vadd.f32 %v51, %v55
    %s57 = sld [smem:[#allocation3 + $0x6]]
    %s58 = sadd.s32 %s57, 192
    %s59 = scalar_lea.vmem %s1, %s58
    %v60 = vld [vmem:[%s59] sm:$0x1]
    %v61 = vadd.f32 %v56, %v60
    %s62 = sld [smem:[#allocation3 + $0x7]]
    %s63 = sadd.s32 %s62, 224
    %s64 = scalar_lea.vmem %s1, %s63
    %v65 = vld [vmem:[%s64] sm:$0x1]
    %v66 = vadd.f32 %v61, %v65
    %s67 = sld [smem:[#allocation3 + $0x8]]
    %s68 = sadd.s32 %s67, 256
    %s69 = scalar_lea.vmem %s1, %s68
    %v70 = vld [vmem:[%s69] sm:$0x1]
    %v71 = vadd.f32 %v66, %v70
    %s72 = sld [smem:[#allocation3 + $0x9]]
    %s73 = sadd.s32 %s72, 288
    %s74 = scalar_lea.vmem %s1, %s73
    %v75 = vld [vmem:[%s74] sm:$0x1]
    %v76 = vadd.f32 %v71, %v75
    %s77 = sld [smem:[#allocation3 + $0xa]]
    %s78 = sadd.s32 %s77, 320
    %s79 = scalar_lea.vmem %s1, %s78
    %v80 = vld [vmem:[%s79] sm:$0x1]
    %v81 = vadd.f32 %v76, %v80
    %s82 = sld [smem:[#allocation3 + $0xb]]
    %s83 = sadd.s32 %s82, 352
    %s84 = scalar_lea.vmem %s1, %s83
    %v85 = vld [vmem:[%s84] sm:$0x1]
    %v86 = vadd.f32 %v81, %v85
    %s87 = sld [smem:[#allocation3 + $0x80]]
    %s88 = scalar_lea.vmem %s1, %s87
    %v89 = vld [vmem:[%s88] sm:$0x1]
    %v90 = vadd.f32 %v27, %v89
    %s91 = sld [smem:[#allocation3 + $0x81]]
    %s92 = sadd.s32 %s91, 32
    %s93 = scalar_lea.vmem %s1, %s92
    %v94 = vld [vmem:[%s93] sm:$0x1]
    %v95 = vadd.f32 %v90, %v94
    %s96 = sld [smem:[#allocation3 + $0x82]]
    %s97 = sadd.s32 %s96, 64
    %s98 = scalar_lea.vmem %s1, %s97
    %v99 = vld [vmem:[%s98] sm:$0x1]
    %v100 = vadd.f32 %v95, %v99
    %s101 = sld [smem:[#allocation3 + $0x83]]
    %s102 = sadd.s32 %s101, 96
    %s103 = scalar_lea.vmem %s1, %s102
    %v104 = vld [vmem:[%s103] sm:$0x1]
    %v105 = vadd.f32 %v100, %v104
    %s106 = sld [smem:[#allocation3 + $0x84]]
    %s107 = sadd.s32 %s106, 128
    %s108 = scalar_lea.vmem %s1, %s107
    %v109 = vld [vmem:[%s108] sm:$0x1]
    %v110 = vadd.f32 %v105, %v109
    %s111 = sld [smem:[#allocation3 + $0x85]]
    %s112 = sadd.s32 %s111, 160
    %s113 = scalar_lea.vmem %s1, %s112
    %v114 = vld [vmem:[%s113] sm:$0x1]
    %v115 = vadd.f32 %v110, %v114
    %s116 = sld [smem:[#allocation3 + $0x86]]
    %s117 = sadd.s32 %s116, 192
    %s118 = scalar_lea.vmem %s1, %s117
    %v119 = vld [vmem:[%s118] sm:$0x1]
    %v120 = vadd.f32 %v115, %v119
    %s121 = sld [smem:[#allocation3 + $0x87]]
    %s122 = sadd.s32 %s121, 224
    %s123 = scalar_lea.vmem %s1, %s122
    %v124 = vld [vmem:[%s123] sm:$0x1]
    %v125 = vadd.f32 %v120, %v124
    %s126 = sld [smem:[#allocation3 + $0x88]]
    %s127 = sadd.s32 %s126, 256
    %s128 = scalar_lea.vmem %s1, %s127
    %v129 = vld [vmem:[%s128] sm:$0x1]
    %v130 = vadd.f32 %v125, %v129
    %s131 = sld [smem:[#allocation3 + $0x89]]
    %s132 = sadd.s32 %s131, 288
    %s133 = scalar_lea.vmem %s1, %s132
    %v134 = vld [vmem:[%s133] sm:$0x1]
    %v135 = vadd.f32 %v130, %v134
    %s136 = sld [smem:[#allocation3 + $0x8a]]
    %s137 = sadd.s32 %s136, 320
    %s138 = scalar_lea.vmem %s1, %s137
    %v139 = vld [vmem:[%s138] sm:$0x1]
    %v140 = vadd.f32 %v135, %v139
    %s141 = sld [smem:[#allocation3 + $0x8b]]
    %s142 = sadd.s32 %s141, 352
    %s143 = scalar_lea.vmem %s1, %s142
    %v144 = vld [vmem:[%s143] sm:$0x1]
    %v145 = vadd.f32 %v140, %v144
    %s146 = sld [smem:[#allocation3 + $0x100]]
    %s147 = scalar_lea.vmem %s1, %s146
    %v148 = vld [vmem:[%s147] sm:$0x1]
    %v149 = vadd.f32 %v27, %v148
    %s150 = sld [smem:[#allocation3 + $0x101]]
    %s151 = sadd.s32 %s150, 32
    %s152 = scalar_lea.vmem %s1, %s151
    %v153 = vld [vmem:[%s152] sm:$0x1]
    %v154 = vadd.f32 %v149, %v153
    %s155 = sld [smem:[#allocation3 + $0x102]]
    %s156 = sadd.s32 %s155, 64
    %s157 = scalar_lea.vmem %s1, %s156
    %v158 = vld [vmem:[%s157] sm:$0x1]
    %v159 = vadd.f32 %v154, %v158
    %s160 = sld [smem:[#allocation3 + $0x103]]
    %s161 = sadd.s32 %s160, 96
    %s162 = scalar_lea.vmem %s1, %s161
    %v163 = vld [vmem:[%s162] sm:$0x1]
    %v164 = vadd.f32 %v159, %v163
    %s165 = sld [smem:[#allocation3 + $0x104]]
    %s166 = sadd.s32 %s165, 128
    %s167 = scalar_lea.vmem %s1, %s166
    %v168 = vld [vmem:[%s167] sm:$0x1]
    %v169 = vadd.f32 %v164, %v168
    %s170 = sld [smem:[#allocation3 + $0x105]]
    %s171 = sadd.s32 %s170, 160
    %s172 = scalar_lea.vmem %s1, %s171
    %v173 = vld [vmem:[%s172] sm:$0x1]
    %v174 = vadd.f32 %v169, %v173
    %s175 = sld [smem:[#allocation3 + $0x106]]
    %s176 = sadd.s32 %s175, 192
    %s177 = scalar_lea.vmem %s1, %s176
    %v178 = vld [vmem:[%s177] sm:$0x1]
    %v179 = vadd.f32 %v174, %v178
    %s180 = sld [smem:[#allocation3 + $0x107]]
    %s181 = sadd.s32 %s180, 224
    %s182 = scalar_lea.vmem %s1, %s181
    %v183 = vld [vmem:[%s182] sm:$0x1]
    %v184 = vadd.f32 %v179, %v183
    %s185 = sld [smem:[#allocation3 + $0x108]]
    %s186 = sadd.s32 %s185, 256
    %s187 = scalar_lea.vmem %s1, %s186
    %v188 = vld [vmem:[%s187] sm:$0x1]
    %v189 = vadd.f32 %v184, %v188
    %s190 = sld [smem:[#allocation3 + $0x109]]
    %s191 = sadd.s32 %s190, 288
    %s192 = scalar_lea.vmem %s1, %s191
    %v193 = vld [vmem:[%s192] sm:$0x1]
    %v194 = vadd.f32 %v189, %v193
    %s195 = sld [smem:[#allocation3 + $0x10a]]
    %s196 = sadd.s32 %s195, 320
    %s197 = scalar_lea.vmem %s1, %s196
    %v198 = vld [vmem:[%s197] sm:$0x1]
    %v199 = vadd.f32 %v194, %v198
    %s200 = sld [smem:[#allocation3 + $0x10b]]
    %s201 = sadd.s32 %s200, 352
    %s202 = scalar_lea.vmem %s1, %s201
    %v203 = vld [vmem:[%s202] sm:$0x1]
    %v204 = vadd.f32 %v199, %v203
    %s205 = sld [smem:[#allocation3 + $0x180]]
    %s206 = scalar_lea.vmem %s1, %s205
    %v207 = vld [vmem:[%s206] sm:$0x1]
    %v208 = vadd.f32 %v27, %v207
    %s209 = sld [smem:[#allocation3 + $0x181]]
    %s210 = sadd.s32 %s209, 32
    %s211 = scalar_lea.vmem %s1, %s210
    %v212 = vld [vmem:[%s211] sm:$0x1]
    %v213 = vadd.f32 %v208, %v212
    %s214 = sld [smem:[#allocation3 + $0x182]]
    %s215 = sadd.s32 %s214, 64
    %s216 = scalar_lea.vmem %s1, %s215
    %v217 = vld [vmem:[%s216] sm:$0x1]
    %v218 = vadd.f32 %v213, %v217
    %s219 = sld [smem:[#allocation3 + $0x183]]
    %s220 = sadd.s32 %s219, 96
    %s221 = scalar_lea.vmem %s1, %s220
    %v222 = vld [vmem:[%s221] sm:$0x1]
    %v223 = vadd.f32 %v218, %v222
    %s224 = sld [smem:[#allocation3 + $0x184]]
    %s225 = sadd.s32 %s224, 128
    %s226 = scalar_lea.vmem %s1, %s225
    %v227 = vld [vmem:[%s226] sm:$0x1]
    %v228 = vadd.f32 %v223, %v227
    %s229 = sld [smem:[#allocation3 + $0x185]]
    %s230 = sadd.s32 %s229, 160
    %s231 = scalar_lea.vmem %s1, %s230
    %v232 = vld [vmem:[%s231] sm:$0x1]
    %v233 = vadd.f32 %v228, %v232
    %s234 = sld [smem:[#allocation3 + $0x186]]
    %s235 = sadd.s32 %s234, 192
    %s236 = scalar_lea.vmem %s1, %s235
    %v237 = vld [vmem:[%s236] sm:$0x1]
    %v238 = vadd.f32 %v233, %v237
    %s239 = sld [smem:[#allocation3 + $0x187]]
    %s240 = sadd.s32 %s239, 224
    %s241 = scalar_lea.vmem %s1, %s240
    %v242 = vld [vmem:[%s241] sm:$0x1]
    %v243 = vadd.f32 %v238, %v242
    %s244 = sld [smem:[#allocation3 + $0x188]]
    %s245 = sadd.s32 %s244, 256
    %s246 = scalar_lea.vmem %s1, %s245
    %v247 = vld [vmem:[%s246] sm:$0x1]
    %v248 = vadd.f32 %v243, %v247
    %s249 = sld [smem:[#allocation3 + $0x189]]
    %s250 = sadd.s32 %s249, 288
    %s251 = scalar_lea.vmem %s1, %s250
    %v252 = vld [vmem:[%s251] sm:$0x1]
    %v253 = vadd.f32 %v248, %v252
    %s254 = sld [smem:[#allocation3 + $0x18a]]
    %s255 = sadd.s32 %s254, 320
    %s256 = scalar_lea.vmem %s1, %s255
    %v257 = vld [vmem:[%s256] sm:$0x1]
    %v258 = vadd.f32 %v253, %v257
    %s259 = sld [smem:[#allocation3 + $0x18b]]
    %s260 = sadd.s32 %s259, 352
    %s261 = scalar_lea.vmem %s1, %s260
    %v262 = vld [vmem:[%s261] sm:$0x1]
    %v263 = vadd.f32 %v258, %v262
    %v265 = vperm.slane %v145, 0
    %v268 = vperm.slane %v204, 0
    %v271 = vperm.slane %v263, 0
    %vm273 = vcmask 1040384
    %v274 = vsel %vm273, %v86, %v265
    %vm275 = vcmask 1041408
    %v276 = vsel %vm275, %v274, %v268
    %vm277 = vcmask 1042432
    %v278 = vsel %vm277, %v276, %v271
    %vm279 = vcmask 1043456
    %v280 = vsel %vm279, %v278, 0.0
    %vm281 = vcmask 1044480
    %v282 = vsel %vm281, %v280, 0.0
    %vm283 = vcmask 1045504
    %v284 = vsel %vm283, %v282, 0.0
    %vm285 = vcmask 1046528
    %v286 = vsel %vm285, %v284, 0.0
    %v287 = vmax.f32 %v286, 0.0
    %v288 = vld [vmem:[%s3] sm:$0xff]
    %v289 = vld [vmem:[%s3 + $0x8] sm:$0xff]
    %v290 = vld [vmem:[%s3 + $0x10] sm:$0xff]
    %v291 = vld [vmem:[%s3 + $0x18] sm:$0xff]
    %v292 = vld [vmem:[%s3 + $0x20] sm:$0xff]
    %v293 = vld [vmem:[%s3 + $0x28] sm:$0xff]
    %v294 = vld [vmem:[%s3 + $0x30] sm:$0xff]
    %v295 = vld [vmem:[%s3 + $0x38] sm:$0xff]
    %v296 = vld [vmem:[%s4] sm:$0x1]
    %v298 = vperm.slane %v296, 0
    %vm300 = vcmask 523264
    %v302 = vsel %vm300, %v287, 0
    %304 = vmatpush.msra.mxu0 0.0
    %305 = vmatpush.msra.mxu0 0.0
    %306 = vmatpush.msra.mxu0 0.0
    %307 = vmatpush.msra.mxu0 0.0
    %308 = vmatpush.msra.mxu0 0.0
    %309 = vmatpush.msra.mxu0 0.0
    %310 = vmatpush.msra.mxu0 0.0
    %311 = vmatpush.msra.mxu0 0.0
    %312 = vmatpush.msra.mxu0 %v295
    %313 = vmatpush.msra.mxu0 %v294
    %314 = vmatpush.msra.mxu0 %v293
    %315 = vmatpush.msra.mxu0 %v292
    %316 = vmatpush.msra.mxu0 %v291
    %317 = vmatpush.msra.mxu0 %v290
    %318 = vmatpush.msra.mxu0 %v289
    %319 = vmatpush.msra.mxu0 %v288
    %320 = vmatmul.f32.gmra.mxu0 %v302
    %v321 = vpop.f32.mrf.mxu0
    %v322 = vadd.f32 %v298, %v321
    %323 = vdwg.mxu0
    %324 = vst [vmem:[#allocation4] sm:$0xff] %v322
    // Predicated region
    $region18: #{tpu_custom_call.1} parent=1 // pred_check
      _
    $region19: #{tpu_custom_call.1} parent=1 // pred_check_branch
      %326 = sbr.rel (0) target = $region21
    $region20: #{tpu_custom_call.1} parent=1 // pred_region
      %328 = vsyncadd [#allocation5], 0
      %s330 = sshll.u32 [#allocation4], 4
      %s331 = int_to_ptr.vmem [resolvable:$true] %s330
      %s332 = sshll.u32 %s5, 4
      %s333 = int_to_ptr.hbm [resolvable:$true] %s332
      %335 = dma.vmem_to_hbm [thread:$0]  %s331, 128, %s333, [#allocation5]
    $region21: #{tpu_custom_call.1} parent=1 // pred_fallthru
      _
    // Predicated region
    $region22: #{tpu_custom_call.1} parent=1 // pred_check
      _
    $region23: #{tpu_custom_call.1} parent=1 // pred_check_branch
      %337 = sbr.rel (0) target = $region25
    $region24: #{tpu_custom_call.1} parent=1 // pred_region
      %339 = dma.done [#allocation5], 128
    $region25: #{tpu_custom_call.1} parent=1 // pred_fallthru
      _
    %340 = vsyncpa [#allocation5], 1

</llo_original>
